<compile_context>
chip_gen: v7x
topology: tpu7x:2x2x1
jax: 0.10.0
libtpu: 0.0.40
codegen_flags: <defaults>
</compile_context>

<pallas_src>
import jax
import jax.numpy as jnp
from jax.experimental import pallas as pl
from jax.experimental.pallas import tpu as pltpu


# --------------------------------------------------------------------------
# init-time weight fusion (hoisted out of the per-forward path)
# --------------------------------------------------------------------------
def _moving_avg_matrix(seq_len: int, kernel_size: int) -> jnp.ndarray:
    """A[src, t] such that (x @ A)[..., t] = mean of replicate-padded window at t."""
    pad = (kernel_size - 1) // 2
    t = jnp.arange(seq_len)
    k = jnp.arange(kernel_size)
    idx = jnp.clip(t[None, :] + k[:, None] - pad, 0, seq_len - 1)  # (K, L)
    cols = jnp.broadcast_to(t[None, :], idx.shape)                  # (K, L)
    A = jnp.zeros((seq_len, seq_len), jnp.float32).at[idx, cols].add(1.0 / kernel_size)
    return A


def dlinear_init(w_seasonal, b_seasonal, w_trend, b_trend, seq_len, kernel_size):
    """One-time fusion of the decomposition + seasonal/trend Linears.

    Returns (w_fused (L, P) bf16, b_fused (1, P) f32). Call once at model init;
    weights and kernel_size are static, so this never runs per forward.
    """
    assert kernel_size % 2 == 1, "moving-average fold assumes an odd kernel_size"
    A = _moving_avg_matrix(seq_len, kernel_size)                 # trend = x @ A
    I = jnp.eye(seq_len, dtype=jnp.float32)
    w_fused = ((I - A) @ w_seasonal.T.astype(jnp.float32)
               + A @ w_trend.T.astype(jnp.float32))              # (L, P)
    b_fused = (b_seasonal + b_trend).astype(jnp.float32)[None, :]  # (1, P)
    return w_fused.astype(jnp.bfloat16), b_fused


# --------------------------------------------------------------------------
# kernel
# --------------------------------------------------------------------------
def _dlinear_kernel(x_ref, w_ref, b_ref, o_ref):
    # x_ref: (TM, L) f32   w_ref: (L, P) bf16   b_ref: (1, P) f32   o_ref: (TM, P) f32
    x = x_ref[...].astype(jnp.bfloat16)   # cast in-kernel: avoids a wrapper HBM pass
    acc = jnp.dot(x, w_ref[...], preferred_element_type=jnp.float32)
    o_ref[...] = (acc + b_ref[...]).astype(o_ref.dtype)


def _pick_row_tile(R: int, L: int, P: int) -> int:
    """Row tile: large enough to amortize per-step overhead, small enough to
    (a) keep the double-buffered f32 x/out tiles + resident weight within a
    conservative VMEM budget (fits v5e's 16 MiB scoped default) and
    (b) leave >= ~8 parallel grid steps so both v7x TensorCores get work."""
    budget = 14 * 1024 * 1024
    fixed = 2 * (L * P * 2 + P * 4)          # resident bf16 weight + f32 bias (x2, worst case)
    per_row = 2 * (L + P) * 4                # double-buffered f32 x tile + f32 out tile
    tm_vmem = max(8, (budget - fixed) // per_row)
    tm_split = max(8, -(-R // 8))            # cdiv(R, 8): aim for >= 8 grid steps
    tm = min(1024, tm_vmem, tm_split)
    return max(8, (tm // 8) * 8)


def dlinear_forward(x_enc, w_fused, b_fused):
    """x_enc: (B, C, L) float32 -> (B, C, pred_len) float32."""
    B, C, L = x_enc.shape
    Lw, P = w_fused.shape
    assert Lw == L, "fused weight seq_len mismatch"

    R = B * C
    TM = _pick_row_tile(R, L, P)
    x2d = x_enc.reshape(R, L)                # metadata-only (contiguous leading dims)

    cost = pl.CostEstimate(
        flops=2 * R * L * P,
        transcendentals=0,
        bytes_accessed=R * L * 4 + L * P * 2 + P * 4 + R * P * 4,
    )

    out = pl.pallas_call(
        _dlinear_kernel,
        out_shape=jax.ShapeDtypeStruct((R, P), jnp.float32),
        grid=(pl.cdiv(R, TM),),              # ragged grid: no row padding
        in_specs=[
            pl.BlockSpec((TM, L), lambda i: (i, 0)),   # x rows stream (f32)
            pl.BlockSpec((L, P), lambda i: (0, 0)),    # fused weight, resident (bf16)
            pl.BlockSpec((1, P), lambda i: (0, 0)),    # fused bias, resident (f32)
        ],
        out_specs=pl.BlockSpec((TM, P), lambda i: (i, 0)),
        compiler_params=pltpu.CompilerParams(
            dimension_semantics=("parallel",),
            vmem_limit_bytes=32 * 1024 * 1024,
        ),
        cost_estimate=cost,
    )(x2d, w_fused, b_fused)

    return out.reshape(B, C, P).astype(x_enc.dtype)   # metadata-only reshape


# --------------------------------------------------------------------------
# pure-JAX reference (mirrors the PyTorch forward, non-individual)
# --------------------------------------------------------------------------
def dlinear_reference(x_enc, kernel_size, w_seasonal, b_seasonal, w_trend, b_trend):
    pad = (kernel_size - 1) // 2
    xp = jnp.concatenate(
        [jnp.repeat(x_enc[..., :1], pad, axis=-1),
         x_enc,
         jnp.repeat(x_enc[..., -1:], pad, axis=-1)], axis=-1)
    L = x_enc.shape[-1]
    windows = jnp.stack([xp[..., t:t + kernel_size] for t in range(L)], axis=-2)
    trend = windows.mean(axis=-1)
    seasonal = x_enc - trend
    s_out = seasonal @ w_seasonal.T + b_seasonal
    t_out = trend @ w_trend.T + b_trend
    return s_out + t_out


if __name__ == "__main__":
    # config: seq_len=16, pred_len=8, enc_in=4, moving_avg=5, individual=False
    B, C, L, P, K = 2, 4, 16, 8, 5

    key = jax.random.PRNGKey(0)
    kx, kbs, kbt = jax.random.split(key, 3)

    x_enc = jax.random.normal(kx, (B, C, L), dtype=jnp.float32)

    # Weights = (1/seq_len) * ones, as in the PyTorch __init__;
    # biases follow nn.Linear default uniform(-1/sqrt(L), 1/sqrt(L)) deterministically.
    w_seasonal = jnp.full((P, L), 1.0 / L, dtype=jnp.float32)
    w_trend = jnp.full((P, L), 1.0 / L, dtype=jnp.float32)
    bound = 1.0 / (L ** 0.5)
    b_seasonal = jax.random.uniform(kbs, (P,), jnp.float32, -bound, bound)
    b_trend = jax.random.uniform(kbt, (P,), jnp.float32, -bound, bound)

    # One-time init-path fusion (decomposition folded into the projection).
    w_fused, b_fused = dlinear_init(w_seasonal, b_seasonal, w_trend, b_trend, L, K)

    out = dlinear_forward(x_enc, w_fused, b_fused)
    out = jax.block_until_ready(out)

    ref = dlinear_reference(x_enc, K, w_seasonal, b_seasonal, w_trend, b_trend)
    assert out.shape == (B, C, P)
    # bf16 MXU streaming -> slightly looser tolerance than pure f32.
    assert jnp.allclose(out, ref, atol=2e-2, rtol=2e-2), "mismatch vs reference"

    print("KERNEL_OK")
</pallas_src>

<mosaic_0001>
module attributes {stable_mosaic.version = 11 : i64} {
  func.func @_dlinear_kernel(%arg0: i32, %arg1: memref<8x16xf32, #tpu.memory_space<vmem>>, %arg2: memref<16x8xbf16, #tpu.memory_space<vmem>>, %arg3: memref<1x8xf32, #tpu.memory_space<vmem>>, %arg4: memref<8x8xf32, #tpu.memory_space<vmem>>) attributes {dimension_semantics = [#tpu.dimension_semantics<parallel>], iteration_bounds = array<i64: 1>, scalar_prefetch = 0 : i64, scratch_operands = 0 : i64, tpu.core_type = #tpu.core_type<tc>, window_params = [{transform_indices = @transform_0, window_bounds = array<i64: 8, 16>}, {pipeline_mode = #tpu.pipeline_mode<synchronous>, transform_indices = @transform_1, window_bounds = array<i64: 16, 8>}, {pipeline_mode = #tpu.pipeline_mode<synchronous>, transform_indices = @transform_2, window_bounds = array<i64: 1, 8>}, {transform_indices = @transform_3, window_bounds = array<i64: 8, 8>}]} {
    %c0 = arith.constant 0 : index
    %c0_0 = arith.constant 0 : index
    %0 = vector.load %arg1[%c0, %c0_0] : memref<8x16xf32, #tpu.memory_space<vmem>>, vector<8x16xf32>
    %1 = arith.truncf %0 : vector<8x16xf32> to vector<8x16xbf16>
    %c0_1 = arith.constant 0 : index
    %c0_2 = arith.constant 0 : index
    %2 = vector.load %arg2[%c0_1, %c0_2] : memref<16x8xbf16, #tpu.memory_space<vmem>>, vector<16x8xbf16>
    %cst = arith.constant dense<0.000000e+00> : vector<8x8xf32>
    %3 = tpu.matmul %1, %2, %cst {dimension_numbers = #tpu.dot_dimension_numbers<[1], [0], [0], [1], [0, 0, 1, 1], [], []>} : vector<8x16xbf16>, vector<16x8xbf16>, vector<8x8xf32> -> vector<8x8xf32>
    %c0_3 = arith.constant 0 : index
    %c0_4 = arith.constant 0 : index
    %4 = vector.load %arg3[%c0_3, %c0_4] : memref<1x8xf32, #tpu.memory_space<vmem>>, vector<1x8xf32>
    %5 = vector.broadcast %4 : vector<1x8xf32> to vector<8x8xf32>
    %6 = arith.addf %3, %5 : vector<8x8xf32>
    %c0_5 = arith.constant 0 : index
    %c0_6 = arith.constant 0 : index
    %7 = vector.load %arg4[%c0_5, %c0_6] : memref<8x8xf32, #tpu.memory_space<vmem>>, vector<8x8xf32>
    tpu.vector_store %arg4[%c0_5, %c0_6], %6 {strides = array<i32>} : memref<8x8xf32, #tpu.memory_space<vmem>>, vector<8x8xf32>,
    return
  }
  func.func @transform_0(%arg0: i32) -> (i32, i32) {
    %c0_i32 = arith.constant 0 : i32
    %c0_i32_0 = arith.constant 0 : i32
    return %arg0, %c0_i32 : i32, i32
  }
  func.func @transform_1(%arg0: i32) -> (i32, i32) {
    %c0_i32 = arith.constant 0 : i32
    %c0_i32_0 = arith.constant 0 : i32
    %c0_i32_1 = arith.constant 0 : i32
    return %c0_i32, %c0_i32_0 : i32, i32
  }
  func.func @transform_2(%arg0: i32) -> (i32, i32) {
    %c0_i32 = arith.constant 0 : i32
    %c0_i32_0 = arith.constant 0 : i32
    %c0_i32_1 = arith.constant 0 : i32
    return %c0_i32, %c0_i32_0 : i32, i32
  }
  func.func @transform_3(%arg0: i32) -> (i32, i32) {
    %c0_i32 = arith.constant 0 : i32
    %c0_i32_0 = arith.constant 0 : i32
    return %arg0, %c0_i32 : i32, i32
  }
}

</mosaic_0001>

<llo_original>
// kernel: tpu_custom_call.1
$region0: #{tpu_custom_call.1}
  #allocation0 [shape = 'u32[]', space=smem, size = 0x4, offset = 0x4, fixed_abs, tag = 'smem constant byte address 0x4 - core index']
  #allocation1 [shape = 'u32[144,128]{1,0:T(1,128)}', space=vmem, size = 0x12000, scoped, tag = 'internal scratch']
  %s0 = inlined_call_operand.vmem [shape: f32[8,16], index: 0, kind: input, shape index: {}]
  %s1 = inlined_call_operand.vmem [shape: bf16[16,8], index: 1, kind: input, shape index: {}]
  %s2 = inlined_call_operand.vmem [shape: f32[1,8], index: 2, kind: input, shape index: {}]
  %s3 = inlined_call_operand.hbm [shape: f32[8,8], index: 3, kind: output, shape index: {}]
  %s4 = sld [smem:[#allocation0]]
  $region22: #{tpu_custom_call.1} parent=0
    _
  %s6 = ssub.s32 1, %s4
  %s7 = scalar_select 0, %s6, %s4
  $region1: #{tpu_custom_call.1} parent=0
    #allocation2 [shape = 'u8[4096]{0}', space=vmem, size = 0x1000, scoped, tag = 'output window, operand 0, single buffered']
    #allocation3 [shape = 's32[1]{0}', space=sflag, size = 0x4, scoped, tag = 'scoped memory for tpu_custom_call.1']
    %8 = vsyncpa [#allocation3], 0
    // Predicated region
    $region2: #{tpu_custom_call.1} parent=1 // pred_check
      _
    $region3: #{tpu_custom_call.1} parent=1 // pred_check_branch
      %10 = sbr.rel (0) target = $region5
    $region4: #{tpu_custom_call.1} parent=1 // pred_region
      _
    $region5: #{tpu_custom_call.1} parent=1 // pred_fallthru
      _
    // Predicated region
    $region6: #{tpu_custom_call.1} parent=1 // pred_check
      _
    $region7: #{tpu_custom_call.1} parent=1 // pred_check_branch
      %12 = sbr.rel (0) target = $region9
    $region8: #{tpu_custom_call.1} parent=1 // pred_region
      _
    $region9: #{tpu_custom_call.1} parent=1 // pred_fallthru
      _
    // Predicated region
    $region10: #{tpu_custom_call.1} parent=1 // pred_check
      _
    $region11: #{tpu_custom_call.1} parent=1 // pred_check_branch
      %14 = sbr.rel (0) target = $region13
    $region12: #{tpu_custom_call.1} parent=1 // pred_region
      _
    $region13: #{tpu_custom_call.1} parent=1 // pred_fallthru
      _
    %v16 = vld [vmem:[%s0] sm:$0xff]
    %v17 = vpack.c.bf16 %v16, %v16
    %v18 = vld [vmem:[%s1] sm:$0xf]
    %v19 = vld [vmem:[%s1 + $0x4] sm:$0xf]
    %v20 = vld [vmem:[%s2] sm:$0x1]
    %v22 = vlaneseq
    %v23 = vshrl.u32 %v22, 7
    %v24 = vsub.s32 0, %v23
    %v25 = vrot.slane %v20, %v24
    %v29 = vunpack.c.l.b16 %v18
    %v30 = vunpack.c.l.b16 %v19
    %v31 = vpack.c.b16 %v30, %v29
    %vm33 = vcmask 130048
    %v35 = vsel %vm33, %v17, 0
    %37 = vmatprep.subr.bf16.mxu0 0
    %38 = vmatpush1.bf16.msra.mxu0 %v31
    %39 = vmatprep.subr.bf16.mxu0 0
    %40 = vmatpush1.bf16.msra.mxu0 0
    %41 = vmatprep.subr.bf16.mxu0 0
    %42 = vmatpush1.bf16.msra.mxu0 0
    %43 = vmatprep.subr.bf16.mxu0 0
    %44 = vmatpush1.bf16.msra.mxu0 0
    %45 = vmatprep.subr.bf16.mxu0 0
    %46 = vmatpush1.bf16.msra.mxu0 0
    %47 = vmatprep.subr.bf16.mxu0 0
    %48 = vmatpush1.bf16.msra.mxu0 0
    %49 = vmatprep.subr.bf16.mxu0 0
    %50 = vmatpush1.bf16.msra.mxu0 0
    %51 = vmatprep.subr.bf16.mxu0 0
    %52 = vmatpush1.bf16.msra.mxu0 0
    %53 = vmatprep.subr.bf16.mxu0 0
    %54 = vmatpush1.bf16.msra.mxu0 0
    %55 = vmatprep.subr.bf16.mxu0 0
    %56 = vmatpush1.bf16.msra.mxu0 0
    %57 = vmatprep.subr.bf16.mxu0 0
    %58 = vmatpush1.bf16.msra.mxu0 0
    %59 = vmatprep.subr.bf16.mxu0 0
    %60 = vmatpush1.bf16.msra.mxu0 0
    %61 = vmatprep.subr.bf16.mxu0 0
    %62 = vmatpush1.bf16.msra.mxu0 0
    %63 = vmatprep.subr.bf16.mxu0 0
    %64 = vmatpush1.bf16.msra.mxu0 0
    %65 = vmatprep.subr.bf16.mxu0 0
    %66 = vmatpush1.bf16.msra.mxu0 0
    %67 = vmatprep.subr.bf16.mxu0 0
    %68 = vmatpush1.bf16.msra.mxu0 0
    %69 = vmatprep.mubr.bf16.mxu0 0
    %70 = vmatmul.mubr.bf16.gmra.mrb[0].mxu0 %v35
    %v71 = vpop.f32.mrb[0].mxu0
    %v72 = vadd.f32 %v25, %v71
    %v73 = vpop.f32.mrb[0].mxu0
    %v74 = vpop.f32.mrb[0].mxu0
    %v75 = vpop.f32.mrb[0].mxu0
    %76 = vdwg.mxu0
    %vm77 = vcmask 64512
    %78 = vst.msk [vmem:[#allocation2] sm:$0xff] %vm77, %v72
    // Predicated region
    $region14: #{tpu_custom_call.1} parent=1 // pred_check
      _
    $region15: #{tpu_custom_call.1} parent=1 // pred_check_branch
      %80 = sbr.rel (0) target = $region17
    $region16: #{tpu_custom_call.1} parent=1 // pred_region
      %s82 = ssub.s32 128, 128
      %83 = vsyncadd [#allocation3], %s82
      %s85 = sshll.u32 [#allocation2], 4
      %s86 = int_to_ptr.vmem [resolvable:$true] %s85
      %88 = dma.vmem_to_hbm [thread:$0]  %s86, 128, %s3, [#allocation3]
    $region17: #{tpu_custom_call.1} parent=1 // pred_fallthru
      _
    // Predicated region
    $region18: #{tpu_custom_call.1} parent=1 // pred_check
      _
    $region19: #{tpu_custom_call.1} parent=1 // pred_check_branch
      %90 = sbr.rel (0) target = $region21
    $region20: #{tpu_custom_call.1} parent=1 // pred_region
      %91 = dma.done [#allocation3], 128
    $region21: #{tpu_custom_call.1} parent=1 // pred_fallthru
      _
    %92 = vsyncpa [#allocation3], 1

</llo_original>
